<compile_context>
chip_gen: v7x
topology: tpu7x:2x2x1
jax: 0.10.0
libtpu: 0.0.40
codegen_flags: <defaults>
</compile_context>

<pallas_src>
import functools

import jax
import jax.numpy as jnp
from jax.experimental import pallas as pl
from jax.experimental.pallas import tpu as pltpu


def _round_up(x, m):
    return ((x + m - 1) // m) * m


def _label_embed_kernel(labels_ref, table_ref, out_ref):
    """One batch tile: out[r, :] = table[labels[r], :] via one-hot MXU matmul."""
    labels = labels_ref[...]                                   # (TB, 1) int32
    tb = out_ref.shape[0]
    num_rows = table_ref.shape[0]
    row_ids = jax.lax.broadcasted_iota(jnp.int32, (tb, num_rows), 1)
    onehot = (row_ids == labels).astype(table_ref.dtype)       # exact 0/1 weights
    out_ref[...] = jnp.dot(
        onehot, table_ref[...], preferred_element_type=jnp.float32
    ).astype(out_ref.dtype)


@functools.partial(jax.jit, static_argnames=("null_row", "tile_b"))
def embedding_gather(labels, drop_mask, table, *, null_row, tile_b=256):
    """out[i, :] = table[where(drop_mask[i], null_row, labels[i]), :]."""
    batch = labels.shape[0]
    num_rows, hidden = table.shape
    # Static guard: a caller asking for drops must have a valid null row.
    assert 0 <= null_row < num_rows, "null_row must index an existing table row"

    # Fold CFG drop into the labels on the (B,) vector; XLA fuses this with
    # the pad/reshape below.  Out-of-range labels -> all-zero row (documented
    # contract; differs from nn.Embedding which would raise).
    labels = jnp.where(
        drop_mask.astype(jnp.int32) != 0, null_row, labels.astype(jnp.int32)
    )

    # Pad the table: lane-dense hidden (multiple of 128), MXU-friendly K rows.
    hidden_p = _round_up(hidden, 128)
    rows_p = _round_up(num_rows, 256 if num_rows >= 256 else 8)
    if (rows_p, hidden_p) != (num_rows, hidden):
        table = jnp.pad(table, ((0, rows_p - num_rows), (0, hidden_p - hidden)))

    # Batch tiling: dense (TB, H) tiles, TB a multiple of 8, default 256.
    tb = max(8, min(_round_up(tile_b, 8), _round_up(batch, 8)))
    padded = _round_up(batch, tb)
    # Guarantee >=2 grid steps when batch allows, so the "parallel" axis can
    # shard across v7x's two TensorCores (neutral on v5e/v6e).
    if padded // tb == 1 and tb >= 16:
        tb = _round_up(tb // 2, 8)
        padded = _round_up(batch, tb)

    if padded != batch:
        labels = jnp.pad(labels, (0, padded - batch))
    labels2 = labels.reshape(padded, 1)

    itemsize = table.dtype.itemsize
    # VMEM budget: table x1 (Buffered(1)) + output x2 + labels x2 (tile padded
    # to (8,128) words) + one-hot temp, with headroom.
    table_bytes = rows_p * hidden_p * itemsize
    out_bytes = 2 * tb * hidden_p * itemsize
    lbl_bytes = 2 * tb * 128 * 4
    onehot_bytes = tb * rows_p * 4
    vmem_bytes = int(1.25 * (table_bytes + out_bytes + lbl_bytes + onehot_bytes))
    vmem_bytes += 2 << 20
    vmem_bytes = max(16 << 20, min(vmem_bytes, 96 << 20))

    cost = pl.CostEstimate(
        flops=2 * padded * rows_p * hidden_p,
        transcendentals=0,
        bytes_accessed=table_bytes + padded * 4 + padded * hidden_p * itemsize,
    )

    out = pl.pallas_call(
        _label_embed_kernel,
        out_shape=jax.ShapeDtypeStruct((padded, hidden_p), table.dtype),
        grid=(padded // tb,),
        in_specs=[
            pl.BlockSpec((tb, 1), lambda i: (i, 0)),
            # Whole table resident in VMEM; constant index_map => one HBM DMA.
            # Buffered(1): invariant input, no second buffer.
            pl.BlockSpec(
                (rows_p, hidden_p),
                lambda i: (0, 0),
                pipeline_mode=pl.Buffered(1),
            ),
        ],
        out_specs=pl.BlockSpec((tb, hidden_p), lambda i: (i, 0)),
        compiler_params=pltpu.CompilerParams(
            dimension_semantics=("parallel",),
            vmem_limit_bytes=vmem_bytes,
        ),
        cost_estimate=cost,
    )(labels2, table)
    return out[:batch, :hidden]


class LabelEmbedder:
    """JAX/Pallas port of the PyTorch LabelEmbedder module (forward pass)."""

    def __init__(self, num_classes, hidden_size, dropout_prob, *, key):
        self.num_classes = num_classes
        self.hidden_size = hidden_size
        self.dropout_prob = dropout_prob
        use_cfg_embedding = int(dropout_prob > 0.0)
        # nn.Embedding default init: N(0, 1).  Deterministic synthetic params.
        self.embedding_table = jax.random.normal(
            key, (num_classes + use_cfg_embedding, hidden_size), dtype=jnp.float32
        )

    def __call__(self, labels, train, force_drop_ids=None, *, rng=None, tile_b=256):
        batch = labels.shape[0]
        use_dropout = train and self.dropout_prob > 0.0
        if use_dropout or force_drop_ids is not None:
            if self.embedding_table.shape[0] <= self.num_classes:
                raise ValueError(
                    "Label dropout requested but no CFG null-class row exists "
                    "(dropout_prob == 0)."
                )
            if force_drop_ids is not None:
                drop_mask = (force_drop_ids == 1).astype(jnp.int32)
            else:
                if rng is None:
                    raise ValueError("rng is required for training-time label dropout.")
                # Note: uses jax.random, so drop patterns will not match the
                # PyTorch module bit-for-bit (expected for a port).
                drop_mask = (
                    jax.random.uniform(rng, (batch,)) < self.dropout_prob
                ).astype(jnp.int32)
        else:
            drop_mask = jnp.zeros((batch,), jnp.int32)
        return embedding_gather(
            labels,
            drop_mask,
            self.embedding_table,
            null_row=self.num_classes if self.dropout_prob > 0.0 else 0,
            tile_b=tile_b,
        )


if __name__ == "__main__":
    num_classes = 10
    hidden_size = 128
    dropout_prob = 0.1
    batch = 8

    root = jax.random.PRNGKey(0)
    k_table, k_labels, k_drop, k_big = jax.random.split(root, 4)

    embedder = LabelEmbedder(num_classes, hidden_size, dropout_prob, key=k_table)

    labels = jax.random.randint(k_labels, (batch,), 0, num_classes, dtype=jnp.int32)
    force_drop_ids = jnp.array([0, 1, 0, 0, 1, 0, 0, 0], dtype=jnp.int32)

    # Inference path (no dropout).
    out_eval = jax.block_until_ready(embedder(labels, train=False))
    # CFG path with forced drops.
    out_forced = jax.block_until_ready(
        embedder(labels, train=False, force_drop_ids=force_drop_ids)
    )
    # Training path with random token drop.
    out_train = jax.block_until_ready(embedder(labels, train=True, rng=k_drop))

    table = embedder.embedding_table
    ref_eval = jnp.take(table, labels, axis=0)
    ref_forced = jnp.take(
        table, jnp.where(force_drop_ids == 1, num_classes, labels), axis=0
    )
    drop_train = jax.random.uniform(k_drop, (batch,)) < dropout_prob
    ref_train = jnp.take(
        table, jnp.where(drop_train, num_classes, labels), axis=0
    )

    assert out_eval.shape == (batch, hidden_size)
    assert out_train.shape == (batch, hidden_size)
    assert jnp.allclose(out_eval, ref_eval), "eval-path mismatch"
    assert jnp.allclose(out_forced, ref_forced), "forced-drop mismatch"
    assert jnp.allclose(out_train, ref_train), "train-drop mismatch"

    # Multi-tile + padding path: batch not a multiple of the tile size.
    big_labels = jax.random.randint(k_big, (20,), 0, num_classes, dtype=jnp.int32)
    out_big = jax.block_until_ready(
        embedding_gather(
            big_labels,
            jnp.zeros((20,), jnp.int32),
            table,
            null_row=num_classes,
            tile_b=8,
        )
    )
    assert jnp.allclose(
        out_big, jnp.take(table, big_labels, axis=0)
    ), "tiled-path mismatch"

    print("KERNEL_OK")
</pallas_src>

<mosaic_0001>
module attributes {stable_mosaic.version = 11 : i64} {
  func.func @_label_embed_kernel(%arg0: i32, %arg1: memref<8x1xi32, #tpu.memory_space<vmem>>, %arg2: memref<16x128xf32, #tpu.memory_space<vmem>>, %arg3: memref<8x128xf32, #tpu.memory_space<vmem>>) attributes {dimension_semantics = [#tpu.dimension_semantics<parallel>], iteration_bounds = array<i64: 1>, scalar_prefetch = 0 : i64, scratch_operands = 0 : i64, tpu.core_type = #tpu.core_type<tc>, window_params = [{transform_indices = @transform_0, window_bounds = array<i64: 8, 1>}, {pipeline_mode = #tpu.pipeline_mode<synchronous>, transform_indices = @transform_1, window_bounds = array<i64: 16, 128>}, {transform_indices = @transform_2, window_bounds = array<i64: 8, 128>}]} {
    %c0 = arith.constant 0 : index
    %c0_0 = arith.constant 0 : index
    %0 = vector.load %arg1[%c0, %c0_0] : memref<8x1xi32, #tpu.memory_space<vmem>>, vector<8x1xi32>
    %1 = tpu.iota {dimensions = array<i32: 1>} : vector<8x16xi32>
    %2 = vector.broadcast %0 : vector<8x1xi32> to vector<8x16xi32>
    %3 = arith.cmpi eq, %1, %2 : vector<8x16xi32>
    %4 = arith.extui %3 : vector<8x16xi1> to vector<8x16xi32>
    %5 = arith.sitofp %4 : vector<8x16xi32> to vector<8x16xf32>
    %c0_1 = arith.constant 0 : index
    %c0_2 = arith.constant 0 : index
    %6 = vector.load %arg2[%c0_1, %c0_2] : memref<16x128xf32, #tpu.memory_space<vmem>>, vector<16x128xf32>
    %cst = arith.constant dense<0.000000e+00> : vector<8x128xf32>
    %7 = tpu.matmul %5, %6, %cst {dimension_numbers = #tpu.dot_dimension_numbers<[1], [0], [0], [1], [0, 0, 1, 1], [], []>} : vector<8x16xf32>, vector<16x128xf32>, vector<8x128xf32> -> vector<8x128xf32>
    %c0_3 = arith.constant 0 : index
    %c0_4 = arith.constant 0 : index
    %8 = vector.load %arg3[%c0_3, %c0_4] : memref<8x128xf32, #tpu.memory_space<vmem>>, vector<8x128xf32>
    tpu.vector_store %arg3[%c0_3, %c0_4], %7 {strides = array<i32>} : memref<8x128xf32, #tpu.memory_space<vmem>>, vector<8x128xf32>,
    return
  }
  func.func @transform_0(%arg0: i32) -> (i32, i32) {
    %c0_i32 = arith.constant 0 : i32
    %c0_i32_0 = arith.constant 0 : i32
    return %arg0, %c0_i32 : i32, i32
  }
  func.func @transform_1(%arg0: i32) -> (i32, i32) {
    %c0_i32 = arith.constant 0 : i32
    %c0_i32_0 = arith.constant 0 : i32
    %c0_i32_1 = arith.constant 0 : i32
    return %c0_i32, %c0_i32_0 : i32, i32
  }
  func.func @transform_2(%arg0: i32) -> (i32, i32) {
    %c0_i32 = arith.constant 0 : i32
    %c0_i32_0 = arith.constant 0 : i32
    return %arg0, %c0_i32 : i32, i32
  }
}

</mosaic_0001>

<llo_original>
// kernel: embedding_gather.1
$region0: #{embedding_gather.1}
  #allocation0 [shape = 'u32[]', space=smem, size = 0x4, offset = 0x4, fixed_abs, tag = 'smem constant byte address 0x4 - core index']
  #allocation1 [shape = 'u32[144,128]{1,0:T(1,128)}', space=vmem, size = 0x12000, scoped, tag = 'internal scratch']
  %s0 = inlined_call_operand.vmem [shape: s32[8,1], index: 0, kind: input, shape index: {}]
  %s1 = inlined_call_operand.vmem [shape: f32[16,128], index: 1, kind: input, shape index: {}]
  %s2 = inlined_call_operand.hbm [shape: f32[8,128], index: 2, kind: output, shape index: {}]
  %s3 = sld [smem:[#allocation0]]
  $region18: #{embedding_gather.1} parent=0
    _
  %s5 = ssub.s32 1, %s3
  %s6 = scalar_select 0, %s5, %s3
  $region1: #{embedding_gather.1} parent=0
    #allocation2 [shape = 'u8[4096]{0}', space=vmem, size = 0x1000, scoped, tag = 'output window, operand 0, single buffered']
    #allocation3 [shape = 's32[1]{0}', space=sflag, size = 0x4, scoped, tag = 'scoped memory for embedding_gather.1']
    %7 = vsyncpa [#allocation3], 0
    // Predicated region
    $region2: #{embedding_gather.1} parent=1 // pred_check
      _
    $region3: #{embedding_gather.1} parent=1 // pred_check_branch
      %9 = sbr.rel (0) target = $region5
    $region4: #{embedding_gather.1} parent=1 // pred_region
      _
    $region5: #{embedding_gather.1} parent=1 // pred_fallthru
      _
    // Predicated region
    $region6: #{embedding_gather.1} parent=1 // pred_check
      _
    $region7: #{embedding_gather.1} parent=1 // pred_check_branch
      %11 = sbr.rel (0) target = $region9
    $region8: #{embedding_gather.1} parent=1 // pred_region
      _
    $region9: #{embedding_gather.1} parent=1 // pred_fallthru
      _
    %v12 = vld [vmem:[%s0] sm:$0xff]
    %v13 = vlaneseq
    %v14 = vand.u32 %v13, 127
    %15 = vset.pattern.permute.xlu0 0
    %16 = vperm.xlu0 %15, %v12
    %v17 = vpop.permute.xlu0 %16
    %vm18 = vcmp.eq.s32.totalorder %v14, %v17
    %v19 = vsel %vm18, 1, 0
    %v20 = vcvt.s32.f32 %v19
    %v21 = vld [vmem:[%s1] sm:$0xff]
    %v22 = vld [vmem:[%s1 + $0x8] sm:$0xff]
    %vm23 = vcmask 130048
    %v25 = vsel %vm23, %v20, 0
    %27 = vmatprep.subr.mxu0 0.0
    %28 = vmatpush1.msra.mxu0 %v21
    %29 = vmatprep.subr.mxu0 0.0
    %30 = vmatpush1.msra.mxu0 %v22
    %31 = vmatprep.subr.mxu0 0.0
    %32 = vmatpush1.msra.mxu0 0.0
    %33 = vmatprep.subr.mxu0 0.0
    %34 = vmatpush1.msra.mxu0 0.0
    %35 = vmatprep.subr.mxu0 0.0
    %36 = vmatpush1.msra.mxu0 0.0
    %37 = vmatprep.subr.mxu0 0.0
    %38 = vmatpush1.msra.mxu0 0.0
    %39 = vmatprep.subr.mxu0 0.0
    %40 = vmatpush1.msra.mxu0 0.0
    %41 = vmatprep.subr.mxu0 0.0
    %42 = vmatpush1.msra.mxu0 0.0
    %43 = vmatprep.subr.mxu0 0.0
    %44 = vmatpush1.msra.mxu0 0.0
    %45 = vmatprep.subr.mxu0 0.0
    %46 = vmatpush1.msra.mxu0 0.0
    %47 = vmatprep.subr.mxu0 0.0
    %48 = vmatpush1.msra.mxu0 0.0
    %49 = vmatprep.subr.mxu0 0.0
    %50 = vmatpush1.msra.mxu0 0.0
    %51 = vmatprep.subr.mxu0 0.0
    %52 = vmatpush1.msra.mxu0 0.0
    %53 = vmatprep.subr.mxu0 0.0
    %54 = vmatpush1.msra.mxu0 0.0
    %55 = vmatprep.subr.mxu0 0.0
    %56 = vmatpush1.msra.mxu0 0.0
    %57 = vmatprep.subr.mxu0 0.0
    %58 = vmatpush1.msra.mxu0 0.0
    %59 = vmatprep.subr.mxu0 0.0
    %60 = vmatpush1.msra.mxu0 0.0
    %61 = vmatprep.subr.mxu0 0.0
    %62 = vmatpush1.msra.mxu0 0.0
    %63 = vmatprep.subr.mxu0 0.0
    %64 = vmatpush1.msra.mxu0 0.0
    %65 = vmatprep.subr.mxu0 0.0
    %66 = vmatpush1.msra.mxu0 0.0
    %67 = vmatprep.subr.mxu0 0.0
    %68 = vmatpush1.msra.mxu0 0.0
    %69 = vmatprep.subr.mxu0 0.0
    %70 = vmatpush1.msra.mxu0 0.0
    %71 = vmatprep.subr.mxu0 0.0
    %72 = vmatpush1.msra.mxu0 0.0
    %73 = vmatprep.subr.mxu0 0.0
    %74 = vmatpush1.msra.mxu0 0.0
    %75 = vmatprep.subr.mxu0 0.0
    %76 = vmatpush1.msra.mxu0 0.0
    %77 = vmatprep.subr.mxu0 0.0
    %78 = vmatpush1.msra.mxu0 0.0
    %79 = vmatprep.subr.mxu0 0.0
    %80 = vmatpush1.msra.mxu0 0.0
    %81 = vmatprep.subr.mxu0 0.0
    %82 = vmatpush1.msra.mxu0 0.0
    %83 = vmatprep.subr.mxu0 0.0
    %84 = vmatpush1.msra.mxu0 0.0
    %85 = vmatprep.subr.mxu0 0.0
    %86 = vmatpush1.msra.mxu0 0.0
    %87 = vmatprep.subr.mxu0 0.0
    %88 = vmatpush1.msra.mxu0 0.0
    %89 = vmatprep.subr.mxu0 0.0
    %90 = vmatpush1.msra.mxu0 0.0
    %91 = vmatprep.mubr.f32.mxu0 0.0
    %92 = vmatmul.mubr.f32.gmra.mrb[0].mxu0 %v25
    %v93 = vpop.f32.mrb[0].mxu0
    %v94 = vadd.f32 0.0, %v93
    %v95 = vpop.f32.mrb[0].mxu0
    %96 = vdwg.mxu0
    %97 = vst [vmem:[#allocation2] sm:$0xff] %v94
    // Predicated region
    $region10: #{embedding_gather.1} parent=1 // pred_check
      _
    $region11: #{embedding_gather.1} parent=1 // pred_check_branch
      %99 = sbr.rel (0) target = $region13
    $region12: #{embedding_gather.1} parent=1 // pred_region
      %s101 = ssub.s32 128, 128
      %102 = vsyncadd [#allocation3], %s101
      %s104 = sshll.u32 [#allocation2], 4
      %s105 = int_to_ptr.vmem [resolvable:$true] %s104
      %107 = dma.vmem_to_hbm [thread:$0]  %s105, 128, %s2, [#allocation3]
    $region13: #{embedding_gather.1} parent=1 // pred_fallthru
      _
    // Predicated region
    $region14: #{embedding_gather.1} parent=1 // pred_check
      _
    $region15: #{embedding_gather.1} parent=1 // pred_check_branch
      %109 = sbr.rel (0) target = $region17
    $region16: #{embedding_gather.1} parent=1 // pred_region
      %110 = dma.done [#allocation3], 128
    $region17: #{embedding_gather.1} parent=1 // pred_fallthru
      _
    %111 = vsyncpa [#allocation3], 1

</llo_original>
